<compile_context>
chip_gen: v7x
topology: tpu7x:2x2x1
jax: 0.10.0
libtpu: 0.0.40
codegen_flags: <defaults>
</compile_context>

<pallas_src>
import functools

import jax
import jax.numpy as jnp
from jax.experimental import pallas as pl
from jax.experimental.pallas import tpu as pltpu

_LANE = 128
_SUBLANE = 8


def _round_up(x, m):
    return (x + m - 1) // m * m


def _vmem_budget_bytes():
    # ~78% of physical VMEM: ~50 MiB on v7x (64 MiB), ~100 MiB on v5e/v6e (128 MiB).
    cap = 64 * 1024 * 1024  # conservative fallback if the query is unavailable
    try:
        cap = int(pltpu.get_tpu_info().vmem_capacity_bytes)
    except Exception:
        pass
    return int(cap * 0.78)


_VMEM_BUDGET = _vmem_budget_bytes()


def ffn_kernel(x_ref, w1_ref, b1_ref, w2_ref, b2_ref, o_ref, acc_ref):
    # x_ref:  (tm, D_in_p)       f32/bf16 input rows (re-used across the k axis)
    # w1_ref: (D_in_p, Hc)       bf16 chunk of W1^T
    # b1_ref: (1, Hc)            f32 chunk of b1
    # w2_ref: (Hc, D_out_p)      bf16 chunk of W2^T
    # b2_ref: (1, D_out_p)       f32
    # o_ref:  (tm, D_out_p)      output tile (written once, at the last k step)
    # acc_ref:(tm, D_out_p) f32  accumulator scratch across hidden chunks
    k = pl.program_id(1)

    @pl.when(k == 0)
    def _():
        acc_ref[...] = jnp.zeros_like(acc_ref)

    x_bf = x_ref[...].astype(jnp.bfloat16)
    h = jnp.dot(x_bf, w1_ref[...], preferred_element_type=jnp.float32)
    h = jnp.maximum(h + b1_ref[...], 0.0)               # bias + ReLU in f32 (VPU)
    acc_ref[...] += jnp.dot(h.astype(jnp.bfloat16), w2_ref[...],
                            preferred_element_type=jnp.float32)

    @pl.when(k == pl.num_programs(1) - 1)
    def _():
        o_ref[...] = (acc_ref[...] + b2_ref[...]).astype(o_ref.dtype)


def prepare_ffn_params(w1, b1, w2, b2, *, lane=_LANE, weight_dtype=jnp.bfloat16):
    """One-time conversion of nn.Linear-layout params to kernel layout.

    w1: (H, D_in), b1: (H,), w2: (D_out, H), b2: (D_out,).
    Transposes the weights, zero-pads D_in / H / D_out to lane multiples, and
    casts weights to bf16 (MXU-native). Zero padding is exact: padded hidden
    units have zero weights and zero bias, so relu(0)=0 contributes nothing.
    """
    hidden, d_in = w1.shape
    d_out = w2.shape[0]
    d_in_p = _round_up(d_in, lane)
    hidden_p = _round_up(hidden, lane)
    d_out_p = _round_up(d_out, lane)
    w1t = jnp.pad(w1, ((0, hidden_p - hidden), (0, d_in_p - d_in))).T  # (D_in_p, H_p)
    w2t = jnp.pad(w2, ((0, d_out_p - d_out), (0, hidden_p - hidden))).T  # (H_p, D_out_p)
    return {
        "w1t": w1t.astype(weight_dtype),
        "b1": jnp.pad(b1, (0, hidden_p - hidden)).reshape(1, hidden_p).astype(jnp.float32),
        "w2t": w2t.astype(weight_dtype),
        "b2": jnp.pad(b2, (0, d_out_p - d_out)).reshape(1, d_out_p).astype(jnp.float32),
        "d_in": int(d_in),
        "d_out": int(d_out),
    }


def _divisor_chunk(hidden_p, target):
    """Largest multiple of 128 that divides hidden_p and is <= target (floor 128)."""
    n = hidden_p // _LANE
    best = 1
    for d in range(1, n + 1):
        if n % d == 0 and d * _LANE <= max(target, _LANE):
            best = d
    return best * _LANE


def _choose_tiles(m, d_in_p, hidden_p, d_out_p, x_bytes, out_bytes, budget):
    """Pick (row tile tm, hidden chunk Hc) that fit the per-generation VMEM budget."""

    def est(tm, hc):
        return (2 * tm * d_in_p * x_bytes        # x tile, double-buffered
                + 2 * d_in_p * hc * 2            # W1^T chunk (bf16), double-buffered
                + 2 * hc * 4                     # b1 chunk (f32)
                + 2 * hc * d_out_p * 2           # W2^T chunk (bf16)
                + 2 * d_out_p * 4                # b2
                + 2 * tm * d_out_p * out_bytes   # output tile
                + tm * d_out_p * 4               # f32 accumulator scratch
                + tm * d_in_p * 2                # bf16 copy of x tile
                + tm * hc * 6                    # f32 + bf16 hidden intermediate
                + tm * d_out_p * 4)              # f32 partial before accumulate

    tm = min(256, _round_up(m, _SUBLANE))
    hc = _divisor_chunk(hidden_p, min(hidden_p, 2048))
    while est(tm, hc) > budget and hc > _LANE:
        hc = _divisor_chunk(hidden_p, hc // 2)
    while est(tm, hc) > budget and tm > 64:
        tm = max(64, _round_up(tm // 2, _SUBLANE))
    # v7x megacore: make sure the "parallel" row axis has >= 2 steps when possible.
    if m > _SUBLANE and pl.cdiv(m, tm) < 2:
        tm = max(_SUBLANE, _round_up(pl.cdiv(m, 2), _SUBLANE))
    return tm, hc


@functools.partial(jax.jit, static_argnames=("d_out",))
def _ffn_forward_impl(x, w1t, b1, w2t, b2, *, d_out):
    lead = x.shape[:-1]
    d_in = x.shape[-1]
    m = 1
    for s in lead:
        m *= s
    d_in_p, hidden_p = w1t.shape
    d_out_p = w2t.shape[1]

    x2d = x.reshape(m, d_in)
    if d_in_p != d_in:
        # Zero columns pair with the zero-padded rows of W1^T (exact).
        x2d = jnp.pad(x2d, ((0, 0), (0, d_in_p - d_in)))

    x_bytes = jnp.dtype(x.dtype).itemsize
    tm, hc = _choose_tiles(m, d_in_p, hidden_p, d_out_p, x_bytes, x_bytes,
                           _VMEM_BUDGET)
    grid = (pl.cdiv(m, tm), hidden_p // hc)

    cost = pl.CostEstimate(
        flops=int(2 * m * (d_in_p * hidden_p + hidden_p * d_out_p)),
        transcendentals=0,
        bytes_accessed=int(m * (d_in_p + d_out_p) * x_bytes
                           + (d_in_p * hidden_p + hidden_p * d_out_p) * 2
                           + (hidden_p + d_out_p) * 4),
    )

    out2d = pl.pallas_call(
        ffn_kernel,
        out_shape=jax.ShapeDtypeStruct((m, d_out_p), x.dtype),
        grid_spec=pltpu.PrefetchScalarGridSpec(
            num_scalar_prefetch=0,
            grid=grid,
            in_specs=[
                pl.BlockSpec((tm, d_in_p), lambda i, k: (i, 0)),     # rows (reused over k)
                pl.BlockSpec((d_in_p, hc), lambda i, k: (0, k)),     # W1^T chunk
                pl.BlockSpec((1, hc), lambda i, k: (0, k)),          # b1 chunk
                pl.BlockSpec((hc, d_out_p), lambda i, k: (k, 0)),    # W2^T chunk
                pl.BlockSpec((1, d_out_p), lambda i, k: (0, 0)),     # b2
            ],
            out_specs=pl.BlockSpec((tm, d_out_p), lambda i, k: (i, 0)),
            scratch_shapes=[pltpu.VMEM((tm, d_out_p), jnp.float32)],
        ),
        compiler_params=pltpu.CompilerParams(
            dimension_semantics=("parallel", "arbitrary"),
            vmem_limit_bytes=_VMEM_BUDGET),
        cost_estimate=cost,
    )(x2d, w1t, b1, w2t, b2)

    if d_out_p != d_out:
        out2d = out2d[:, :d_out]
    return out2d.reshape(*lead, d_out)


def ffn_forward(x, params):
    """x: (..., D_in); params from prepare_ffn_params()."""
    return _ffn_forward_impl(x, params["w1t"], params["b1"], params["w2t"],
                             params["b2"], d_out=params["d_out"])


def init_ffn_params(key, ffn_num_input, ffn_num_hiddens, ffn_num_outputs,
                    dtype=jnp.float32):
    # Deterministic init mirroring nn.Linear's U(-1/sqrt(fan_in), 1/sqrt(fan_in)),
    # in PyTorch layout: W1 (H, D_in), W2 (D_out, H).
    k1, k2, k3, k4 = jax.random.split(key, 4)
    bound1 = 1.0 / (ffn_num_input ** 0.5)
    bound2 = 1.0 / (ffn_num_hiddens ** 0.5)
    w1 = jax.random.uniform(k1, (ffn_num_hiddens, ffn_num_input),
                            minval=-bound1, maxval=bound1, dtype=dtype)
    b1 = jax.random.uniform(k2, (ffn_num_hiddens,),
                            minval=-bound1, maxval=bound1, dtype=dtype)
    w2 = jax.random.uniform(k3, (ffn_num_outputs, ffn_num_hiddens),
                            minval=-bound2, maxval=bound2, dtype=dtype)
    b2 = jax.random.uniform(k4, (ffn_num_outputs,),
                            minval=-bound2, maxval=bound2, dtype=dtype)
    return w1, b1, w2, b2


if __name__ == "__main__":
    # Small shapes consistent with the module: X is (batch, seq, ffn_num_input).
    batch, seq = 2, 8
    ffn_num_input, ffn_num_hiddens, ffn_num_outputs = 32, 64, 32

    key = jax.random.PRNGKey(0)
    kx, kp = jax.random.split(key)
    x = jax.random.normal(kx, (batch, seq, ffn_num_input), dtype=jnp.float32)
    w1, b1, w2, b2 = init_ffn_params(kp, ffn_num_input, ffn_num_hiddens,
                                     ffn_num_outputs)

    # One-time parameter prep (transpose + lane padding + bf16 cast).
    params = prepare_ffn_params(w1, b1, w2, b2)

    out = jax.block_until_ready(ffn_forward(x, params))

    # Reference in plain f32 JAX (same math as the PyTorch module). bf16 MXU
    # inputs with f32 accumulation change low-order bits -> loosened tolerance.
    ref = jnp.maximum(x @ w1.T + b1, 0.0) @ w2.T + b2
    assert out.shape == (batch, seq, ffn_num_outputs)
    max_err = float(jnp.max(jnp.abs(out - ref)))
    assert jnp.allclose(out, ref, atol=2e-2, rtol=2e-2), f"max abs err {max_err}"

    print("KERNEL_OK")
</pallas_src>

<mosaic_0001>
module attributes {stable_mosaic.version = 11 : i64} {
  func.func @ffn_kernel(%arg0: i32, %arg1: i32, %arg2: memref<8x128xf32, #tpu.memory_space<vmem>>, %arg3: memref<128x128xbf16, #tpu.memory_space<vmem>>, %arg4: memref<1x128xf32, #tpu.memory_space<vmem>>, %arg5: memref<128x128xbf16, #tpu.memory_space<vmem>>, %arg6: memref<1x128xf32, #tpu.memory_space<vmem>>, %arg7: memref<8x128xf32, #tpu.memory_space<vmem>>, %arg8: memref<8x128xf32, #tpu.memory_space<vmem>>) attributes {dimension_semantics = [#tpu.dimension_semantics<parallel>, #tpu.dimension_semantics<arbitrary>], iteration_bounds = array<i64: 2, 1>, scalar_prefetch = 0 : i64, scratch_operands = 1 : i64, tpu.core_type = #tpu.core_type<tc>, window_params = [{transform_indices = @transform_0, window_bounds = array<i64: 8, 128>}, {transform_indices = @transform_1, window_bounds = array<i64: 128, 128>}, {transform_indices = @transform_2, window_bounds = array<i64: 1, 128>}, {transform_indices = @transform_3, window_bounds = array<i64: 128, 128>}, {pipeline_mode = #tpu.pipeline_mode<synchronous>, transform_indices = @transform_4, window_bounds = array<i64: 1, 128>}, {transform_indices = @transform_5, window_bounds = array<i64: 8, 128>}]} {
    %c0_i32 = arith.constant 0 : i32
    %0 = arith.cmpi eq, %arg1, %c0_i32 : i32
    %1 = arith.extui %0 : i1 to i32
    %c0_i32_0 = arith.constant 0 : i32
    %2 = arith.cmpi ne, %1, %c0_i32_0 : i32
    scf.if %2 {
      %cst_16 = arith.constant 0.000000e+00 : f32
      %21 = vector.broadcast %cst_16 : f32 to vector<8x128xf32>
      %c0_17 = arith.constant 0 : index
      %c0_18 = arith.constant 0 : index
      %22 = vector.load %arg8[%c0_17, %c0_18] : memref<8x128xf32, #tpu.memory_space<vmem>>, vector<8x128xf32>
      tpu.vector_store %arg8[%c0_17, %c0_18], %21 {strides = array<i32>} : memref<8x128xf32, #tpu.memory_space<vmem>>, vector<8x128xf32>,
    } else {
    }
    %c0 = arith.constant 0 : index
    %c0_1 = arith.constant 0 : index
    %3 = vector.load %arg2[%c0, %c0_1] : memref<8x128xf32, #tpu.memory_space<vmem>>, vector<8x128xf32>
    %4 = arith.truncf %3 : vector<8x128xf32> to vector<8x128xbf16>
    %c0_2 = arith.constant 0 : index
    %c0_3 = arith.constant 0 : index
    %5 = vector.load %arg3[%c0_2, %c0_3] : memref<128x128xbf16, #tpu.memory_space<vmem>>, vector<128x128xbf16>
    %cst = arith.constant dense<0.000000e+00> : vector<8x128xf32>
    %6 = tpu.matmul %4, %5, %cst {dimension_numbers = #tpu.dot_dimension_numbers<[1], [0], [0], [1], [0, 0, 1, 1], [], []>} : vector<8x128xbf16>, vector<128x128xbf16>, vector<8x128xf32> -> vector<8x128xf32>
    %c0_4 = arith.constant 0 : index
    %c0_5 = arith.constant 0 : index
    %7 = vector.load %arg4[%c0_4, %c0_5] : memref<1x128xf32, #tpu.memory_space<vmem>>, vector<1x128xf32>
    %8 = vector.broadcast %7 : vector<1x128xf32> to vector<8x128xf32>
    %9 = arith.addf %6, %8 : vector<8x128xf32>
    %cst_6 = arith.constant 0.000000e+00 : f32
    %10 = vector.broadcast %cst_6 : f32 to vector<8x128xf32>
    %11 = arith.maximumf %9, %10 : vector<8x128xf32>
    %c0_7 = arith.constant 0 : index
    %c0_8 = arith.constant 0 : index
    %12 = vector.load %arg8[%c0_7, %c0_8] : memref<8x128xf32, #tpu.memory_space<vmem>>, vector<8x128xf32>
    %13 = arith.truncf %11 : vector<8x128xf32> to vector<8x128xbf16>
    %c0_9 = arith.constant 0 : index
    %c0_10 = arith.constant 0 : index
    %14 = vector.load %arg5[%c0_9, %c0_10] : memref<128x128xbf16, #tpu.memory_space<vmem>>, vector<128x128xbf16>
    %cst_11 = arith.constant dense<0.000000e+00> : vector<8x128xf32>
    %15 = tpu.matmul %13, %14, %cst_11 {dimension_numbers = #tpu.dot_dimension_numbers<[1], [0], [0], [1], [0, 0, 1, 1], [], []>} : vector<8x128xbf16>, vector<128x128xbf16>, vector<8x128xf32> -> vector<8x128xf32>
    %16 = arith.addf %12, %15 : vector<8x128xf32>
    %c0_12 = arith.constant 0 : index
    %c0_13 = arith.constant 0 : index
    %17 = vector.load %arg8[%c0_12, %c0_13] : memref<8x128xf32, #tpu.memory_space<vmem>>, vector<8x128xf32>
    tpu.vector_store %arg8[%c0_12, %c0_13], %16 {strides = array<i32>} : memref<8x128xf32, #tpu.memory_space<vmem>>, vector<8x128xf32>,
    %c0_i32_14 = arith.constant 0 : i32
    %18 = arith.cmpi eq, %arg1, %c0_i32_14 : i32
    %19 = arith.extui %18 : i1 to i32
    %c0_i32_15 = arith.constant 0 : i32
    %20 = arith.cmpi ne, %19, %c0_i32_15 : i32
    scf.if %20 {
      %c0_16 = arith.constant 0 : index
      %c0_17 = arith.constant 0 : index
      %21 = vector.load %arg8[%c0_16, %c0_17] : memref<8x128xf32, #tpu.memory_space<vmem>>, vector<8x128xf32>
      %c0_18 = arith.constant 0 : index
      %c0_19 = arith.constant 0 : index
      %22 = vector.load %arg6[%c0_18, %c0_19] : memref<1x128xf32, #tpu.memory_space<vmem>>, vector<1x128xf32>
      %23 = vector.broadcast %22 : vector<1x128xf32> to vector<8x128xf32>
      %24 = arith.addf %21, %23 : vector<8x128xf32>
      %c0_20 = arith.constant 0 : index
      %c0_21 = arith.constant 0 : index
      %25 = vector.load %arg7[%c0_20, %c0_21] : memref<8x128xf32, #tpu.memory_space<vmem>>, vector<8x128xf32>
      tpu.vector_store %arg7[%c0_20, %c0_21], %24 {strides = array<i32>} : memref<8x128xf32, #tpu.memory_space<vmem>>, vector<8x128xf32>,
    } else {
    }
    return
  }
  func.func @transform_0(%arg0: i32, %arg1: i32) -> (i32, i32) {
    %c0_i32 = arith.constant 0 : i32
    %c0_i32_0 = arith.constant 0 : i32
    return %arg0, %c0_i32 : i32, i32
  }
  func.func @transform_1(%arg0: i32, %arg1: i32) -> (i32, i32) {
    %c0_i32 = arith.constant 0 : i32
    %c0_i32_0 = arith.constant 0 : i32
    return %c0_i32, %arg1 : i32, i32
  }
  func.func @transform_2(%arg0: i32, %arg1: i32) -> (i32, i32) {
    %c0_i32 = arith.constant 0 : i32
    %c0_i32_0 = arith.constant 0 : i32
    return %c0_i32, %arg1 : i32, i32
  }
  func.func @transform_3(%arg0: i32, %arg1: i32) -> (i32, i32) {
    %c0_i32 = arith.constant 0 : i32
    %c0_i32_0 = arith.constant 0 : i32
    return %arg1, %c0_i32 : i32, i32
  }
  func.func @transform_4(%arg0: i32, %arg1: i32) -> (i32, i32) {
    %c0_i32 = arith.constant 0 : i32
    %c0_i32_0 = arith.constant 0 : i32
    %c0_i32_1 = arith.constant 0 : i32
    return %c0_i32, %c0_i32_0 : i32, i32
  }
  func.func @transform_5(%arg0: i32, %arg1: i32) -> (i32, i32) {
    %c0_i32 = arith.constant 0 : i32
    %c0_i32_0 = arith.constant 0 : i32
    return %arg0, %c0_i32 : i32, i32
  }
}

</mosaic_0001>

<llo_original>
// kernel: _ffn_forward_impl.1
$region0: #{_ffn_forward_impl.1}
  #allocation0 [shape = 'u32[]', space=smem, size = 0x4, offset = 0x4, fixed_abs, tag = 'smem constant byte address 0x4 - core index']
  #allocation1 [shape = 'u32[144,128]{1,0:T(1,128)}', space=vmem, size = 0x12000, scoped, tag = 'internal scratch']
  #allocation2 [shape = 'f32[8,128]{1,0:T(8,128)}', space=vmem, size = 0x1000, scoped, tag = 'scratch operand']
  %s0 = inlined_call_operand.vmem [shape: f32[16,128], index: 0, kind: input, shape index: {}]
  %s1 = inlined_call_operand.hbm [shape: bf16[128,128], index: 1, kind: input, shape index: {}]
  %s2 = inlined_call_operand.vmem [shape: f32[1,128], index: 2, kind: input, shape index: {}]
  %s3 = inlined_call_operand.hbm [shape: bf16[128,128], index: 3, kind: input, shape index: {}]
  %s4 = inlined_call_operand.vmem [shape: f32[1,128], index: 4, kind: input, shape index: {}]
  %s5 = inlined_call_operand.vmem [shape: f32[16,128], index: 5, kind: output, shape index: {}]
  %s6 = sld [smem:[#allocation0]]
  $region69: #{_ffn_forward_impl.1} parent=0
    _
  %s8 = ssub.s32 1, %s6
  %s9 = scalar_select 0, %s8, %s6
  $region1: #{_ffn_forward_impl.1} parent=0
    #allocation3 [shape = 'u8[32768]{0}', space=vmem, size = 0x8000, scoped, tag = 'input window, operand 1, single buffered']
    #allocation4 [shape = 's32[2]{0}', space=sflag, size = 0x8, scoped, tag = 'scoped memory for _ffn_forward_impl.1']
    #allocation5 [shape = 'u8[32768]{0}', space=vmem, size = 0x8000, scoped, tag = 'input window, operand 3, single buffered']
    #allocation6 [shape = 's32[1]{0}', space=sflag, size = 0x4, scoped, tag = 'scoped memory for _ffn_forward_impl.1']
    %10 = vsyncpa [#allocation4], 0
    %11 = vsyncpa [#allocation6], 0
    loop: start=0, step=1, limit=4
    $region2: #{_ffn_forward_impl.1} parent=1 // loop_pre_header
      _
    $region3: #{_ffn_forward_impl.1} parent=1 // loop_header
      %s13 = sphi 0, %s17
      %p14 = scmp.ge.s32.totalorder %s13, 4
      %s20 = sphi 0, %s32
      %s21 = sphi 0, %s28
      %s22 = sphi 0, %s20
      %s23 = sphi 0, %s21
      %s24 = sphi 0, %s22
      %s25 = sphi 0, %s23
      %s35 = sphi 0, %s37
      %s38 = sphi 0, %s35
      %s39 = sphi 0, %s38
      %s55 = sphi 0, %s39
      %s61 = sphi 0, %s63
      %s64 = sphi 0, %s61
      %s65 = sphi 0, %s64
      %s81 = sphi 0, %s65
      %s87 = sphi 0, %s89
      %s90 = sphi 0, %s87
      %s91 = sphi 0, %s90
      %s107 = sphi 0, %s91
      %s113 = sphi 0, %s115
      %s116 = sphi 0, %s113
      %s117 = sphi 0, %s116
      %s133 = sphi 0, %s117
      %s137 = sphi 0, %s137
      %s139 = sphi 0, %s137
      %s140 = sphi 0, %s139
      %s154 = sphi 0, %s140
      %s160 = sphi 0, %s162
      %s163 = sphi 0, %s160
      %s164 = sphi 0, %s163
      %s180 = sphi 0, %s164
    $region4: #{_ffn_forward_impl.1} parent=1 // loop_header_branch
      %16 = sbr.rel (%p14) target = $region8
    $region5: #{_ffn_forward_impl.1} parent=1 // loop_body
      %s18 = ssub.s32 %s13, 1
      %s19 = ssub.s32 %s13, 2
      %s26 = sadd.s32 1, %s21
      %p27 = scmp.ge.s32.totalorder %s26, 1
      %s28 = scalar_select %p27, 0, %s26
      %s29 = sadd.s32 1, %s20
      %s30 = scalar_select %p27, %s29, %s20
      %p31 = scmp.ge.s32.totalorder %s30, 2
      %s32 = scalar_select %p31, 0, %s30
      %s33 = ssub.s32 %s20, %s32
      %p34 = scmp.eq.s32.totalorder %s33, 0
      %s36 = sadd.s32 %s35, 1
      %s37 = scalar_select %p34, %s35, %s36
      %p40 = pneg %p34
      %p41 = scmp.eq.s32.totalorder %s13, 1
      %p42 = por %p40, %p41
      %p43 = scmp.ne.s32.totalorder %s35, %s38
      %p44 = scmp.eq.s32.totalorder %s13, 0
      %p45 = por %p43, %p44
      %p46 = scmp.ne.s32.totalorder %s35, %s38
      %p47 = scmp.eq.s32.totalorder %s18, 1
      %p48 = por %p46, %p47
      %p49 = scmp.ne.s32.totalorder %s38, %s39
      %p50 = scmp.eq.s32.totalorder %s18, 0
      %p51 = por %p49, %p50
      %p52 = scmp.ne.s32.totalorder %s38, %s39
      %p53 = scmp.eq.s32.totalorder %s19, 1
      %p54 = por %p52, %p53
      %p56 = scmp.ne.s32.totalorder %s39, %s55
      %p57 = scmp.eq.s32.totalorder %s19, 0
      %p58 = por %p56, %p57
      %s59 = ssub.s32 %s21, %s28
      %p60 = scmp.eq.s32.totalorder %s59, 0
      %s62 = sadd.s32 %s61, 1
      %s63 = scalar_select %p60, %s61, %s62
      %p66 = pneg %p60
      %p67 = scmp.eq.s32.totalorder %s13, 1
      %p68 = por %p66, %p67
      %p69 = scmp.ne.s32.totalorder %s61, %s64
      %p70 = scmp.eq.s32.totalorder %s13, 0
      %p71 = por %p69, %p70
      %p72 = scmp.ne.s32.totalorder %s61, %s64
      %p73 = scmp.eq.s32.totalorder %s18, 1
      %p74 = por %p72, %p73
      %p75 = scmp.ne.s32.totalorder %s64, %s65
      %p76 = scmp.eq.s32.totalorder %s18, 0
      %p77 = por %p75, %p76
      %p78 = scmp.ne.s32.totalorder %s64, %s65
      %p79 = scmp.eq.s32.totalorder %s19, 1
      %p80 = por %p78, %p79
      %p82 = scmp.ne.s32.totalorder %s65, %s81
      %p83 = scmp.eq.s32.totalorder %s19, 0
      %p84 = por %p82, %p83
      %s85 = ssub.s32 %s21, %s28
      %p86 = scmp.eq.s32.totalorder %s85, 0
      %s88 = sadd.s32 %s87, 1
      %s89 = scalar_select %p86, %s87, %s88
      %p92 = pneg %p86
      %p93 = scmp.eq.s32.totalorder %s13, 1
      %p94 = por %p92, %p93
      %p95 = scmp.ne.s32.totalorder %s87, %s90
      %p96 = scmp.eq.s32.totalorder %s13, 0
      %p97 = por %p95, %p96
      %p98 = scmp.ne.s32.totalorder %s87, %s90
      %p99 = scmp.eq.s32.totalorder %s18, 1
      %p100 = por %p98, %p99
      %p101 = scmp.ne.s32.totalorder %s90, %s91
      %p102 = scmp.eq.s32.totalorder %s18, 0
      %p103 = por %p101, %p102
      %p104 = scmp.ne.s32.totalorder %s90, %s91
      %p105 = scmp.eq.s32.totalorder %s19, 1
      %p106 = por %p104, %p105
      %p108 = scmp.ne.s32.totalorder %s91, %s107
      %p109 = scmp.eq.s32.totalorder %s19, 0
      %p110 = por %p108, %p109
      %s111 = ssub.s32 %s21, %s28
      %p112 = scmp.eq.s32.totalorder %s111, 0
      %s114 = sadd.s32 %s113, 1
      %s115 = scalar_select %p112, %s113, %s114
      %p118 = pneg %p112
      %p119 = scmp.eq.s32.totalorder %s13, 1
      %p120 = por %p118, %p119
      %p121 = scmp.ne.s32.totalorder %s113, %s116
      %p122 = scmp.eq.s32.totalorder %s13, 0
      %p123 = por %p121, %p122
      %p124 = scmp.ne.s32.totalorder %s113, %s116
      %p125 = scmp.eq.s32.totalorder %s18, 1
      %p126 = por %p124, %p125
      %p127 = scmp.ne.s32.totalorder %s116, %s117
      %p128 = scmp.eq.s32.totalorder %s18, 0
      %p129 = por %p127, %p128
      %p130 = scmp.ne.s32.totalorder %s116, %s117
      %p131 = scmp.eq.s32.totalorder %s19, 1
      %p132 = por %p130, %p131
      %p134 = scmp.ne.s32.totalorder %s117, %s133
      %p135 = scmp.eq.s32.totalorder %s19, 0
      %p136 = por %p134, %p135
      %s138 = sadd.s32 %s137, 1
      %p141 = scmp.eq.s32.totalorder %s13, 1
      %p142 = scmp.ne.s32.totalorder %s137, %s139
      %p143 = scmp.eq.s32.totalorder %s13, 0
      %p144 = por %p142, %p143
      %p145 = scmp.ne.s32.totalorder %s137, %s139
      %p146 = scmp.eq.s32.totalorder %s18, 1
      %p147 = por %p145, %p146
      %p148 = scmp.ne.s32.totalorder %s139, %s140
      %p149 = scmp.eq.s32.totalorder %s18, 0
      %p150 = por %p148, %p149
      %p151 = scmp.ne.s32.totalorder %s139, %s140
      %p152 = scmp.eq.s32.totalorder %s19, 1
      %p153 = por %p151, %p152
      %p155 = scmp.ne.s32.totalorder %s140, %s154
      %p156 = scmp.eq.s32.totalorder %s19, 0
      %p157 = por %p155, %p156
      %s158 = ssub.s32 %s20, %s32
      %p159 = scmp.eq.s32.totalorder %s158, 0
      %s161 = sadd.s32 %s160, 1
      %s162 = scalar_select %p159, %s160, %s161
      %p165 = pneg %p159
      %p166 = scmp.eq.s32.totalorder %s13, 1
      %p167 = por %p165, %p166
      %p168 = scmp.ne.s32.totalorder %s160, %s163
      %p169 = scmp.eq.s32.totalorder %s13, 0
      %p170 = por %p168, %p169
      %p171 = scmp.ne.s32.totalorder %s160, %s163
      %p172 = scmp.eq.s32.totalorder %s18, 1
      %p173 = por %p171, %p172
      %p174 = scmp.ne.s32.totalorder %s163, %s164
      %p175 = scmp.eq.s32.totalorder %s18, 0
      %p176 = por %p174, %p175
      %p177 = scmp.ne.s32.totalorder %s163, %s164
      %p178 = scmp.eq.s32.totalorder %s19, 1
      %p179 = por %p177, %p178
      %p181 = scmp.ne.s32.totalorder %s164, %s180
      %p182 = scmp.eq.s32.totalorder %s19, 0
      %p183 = por %p181, %p182
      %p184 = scmp.le.s32.totalorder 1, %s13
      %p185 = scmp.lt.s32.totalorder %s13, 3
      %p186 = pnand %p184, %p185
      %p187 = pneg %p186
      // Predicated region
      $region9: #{_ffn_forward_impl.1} parent=5 // pred_check
        _
      $region10: #{_ffn_forward_impl.1} parent=5 // pred_check_branch
        %189 = sbr.rel (%p186) target = $region12
      $region11: #{_ffn_forward_impl.1} parent=5 // pred_region
        %s190 = ssub.s32 %s13, 1
        // Predicated region
        $region13: #{_ffn_forward_impl.1} parent=11 // pred_check
          %p191 = pneg %p77
        $region14: #{_ffn_forward_impl.1} parent=11 // pred_check_branch
          %193 = sbr.rel (%p191) target = $region16
        $region15: #{_ffn_forward_impl.1} parent=11 // pred_region
          %s195 = ssub.s32 1024, 1024
          %196 = vsyncadd [#allocation4], %s195
          %s197 = smul.addr %s23, 64
          %s198 = scalar_lea.hbm %s1, %s197
          %s199 = sshll.u32 [#allocation3], 4
          %s200 = int_to_ptr.vmem [resolvable:$true] %s199
          %205 = dma.hbm_to_vmem [thread:$0]  %s198, 1024, %s200, [#allocation4], 64, 64, 4
        $region16: #{_ffn_forward_impl.1} parent=11 // pred_fallthru
          _
        // Predicated region
        $region17: #{_ffn_forward_impl.1} parent=11 // pred_check
          %p206 = pneg %p103
        $region18: #{_ffn_forward_impl.1} parent=11 // pred_check_branch
          %208 = sbr.rel (%p206) target = $region20
        $region19: #{_ffn_forward_impl.1} parent=11 // pred_region
          %p209 = scmp.lt.s32.totalorder %s23, 0
          %s210 = scalar_select %p209, %s23, 0
          %s211 = scalar_lea.vmem %s2, %s210
        $region20: #{_ffn_forward_impl.1} parent=11 // pred_fallthru
          _
        // Predicated region
        $region21: #{_ffn_forward_impl.1} parent=11 // pred_check
          %p212 = pneg %p129
        $region22: #{_ffn_forward_impl.1} parent=11 // pred_check_branch
          %214 = sbr.rel (%p212) target = $region24
        $region23: #{_ffn_forward_impl.1} parent=11 // pred_region
          %s215 = smul.u32 16, %s23
          %s217 = ssub.s32 1024, 1024
          %218 = vsyncadd [#allocation6], %s217
          %s219 = smul.addr %s215, 64
          %s220 = scalar_lea.hbm %s3, %s219
          %s221 = sshll.u32 [#allocation5], 4
          %s222 = int_to_ptr.vmem [resolvable:$true] %s221
          %227 = dma.hbm_to_vmem [thread:$0]  %s220, 1024, %s222, [#allocation6], 64, 64, 4
        $region24: #{_ffn_forward_impl.1} parent=11 // pred_fallthru
          _
        // Predicated region
        $region25: #{_ffn_forward_impl.1} parent=11 // pred_check
          %p228 = pneg %p150
        $region26: #{_ffn_forward_impl.1} parent=11 // pred_check_branch
          %230 = sbr.rel (%p228) target = $region28
        $region27: #{_ffn_forward_impl.1} parent=11 // pred_region
          _
        $region28: #{_ffn_forward_impl.1} parent=11 // pred_fallthru
          _
      $region12: #{_ffn_forward_impl.1} parent=5 // pred_fallthru
        _
      %p231 = scmp.lt.s32.totalorder %s13, 2
      // Predicated region
      $region29: #{_ffn_forward_impl.1} parent=5 // pred_check
        %p232 = pneg %p231
      $region30: #{_ffn_forward_impl.1} parent=5 // pred_check_branch
        %234 = sbr.rel (%p232) target = $region32
      $region31: #{_ffn_forward_impl.1} parent=5 // pred_region
        // Predicated region
        $region33: #{_ffn_forward_impl.1} parent=31 // pred_check
          %p235 = pneg %p45
        $region34: #{_ffn_forward_impl.1} parent=31 // pred_check_branch
          %237 = sbr.rel (%p235) target = $region36
        $region35: #{_ffn_forward_impl.1} parent=31 // pred_region
          %p238 = scmp.lt.s32.totalorder %s20, 1
          %s239 = scalar_select %p238, %s20, 1
          %s240 = smul.addr %s239, 8
          %s241 = scalar_lea.vmem %s0, %s240
        $region36: #{_ffn_forward_impl.1} parent=31 // pred_fallthru
          _
      $region32: #{_ffn_forward_impl.1} parent=5 // pred_fallthru
        _
      %p242 = scmp.le.s32.totalorder 1, %s13
      %p243 = scmp.lt.s32.totalorder %s13, 3
      %p244 = pnand %p242, %p243
      %p245 = pneg %p244
      // Predicated region
      $region37: #{_ffn_forward_impl.1} parent=5 // pred_check
        _
      $region38: #{_ffn_forward_impl.1} parent=5 // pred_check_branch
        %247 = sbr.rel (%p244) target = $region40
      $region39: #{_ffn_forward_impl.1} parent=5 // pred_region
        %s248 = ssub.s32 %s13, 1
        // Predicated region
        $region41: #{_ffn_forward_impl.1} parent=39 // pred_check
          %p249 = pneg %p77
        $region42: #{_ffn_forward_impl.1} parent=39 // pred_check_branch
          %251 = sbr.rel (%p249) target = $region44
        $region43: #{_ffn_forward_impl.1} parent=39 // pred_region
          %252 = dma.done [#allocation4], 1024
        $region44: #{_ffn_forward_impl.1} parent=39 // pred_fallthru
          _
        // Predicated region
        $region45: #{_ffn_forward_impl.1} parent=39 // pred_check
          %p253 = pneg %p129
        $region46: #{_ffn_forward_impl.1} parent=39 // pred_check_branch
          %255 = sbr.rel (%p253) target = $region48
        $region47: #{_ffn_forward_impl.1} parent=39 // pred_region
          %256 = dma.done [#allocation6], 1024
        $region48: #{_ffn_forward_impl.1} parent=39 // pred_fallthru
          _
        %p257 = scmp.lt.s32.totalorder %s22, 1
        %s258 = scalar_select %p257, %s22, 1
        %s259 = smul.addr %s258, 8
        %s260 = scalar_lea.vmem %s0, %s259
        %p261 = pneg %p51
        %p262 = pneg %p48
        %p263 = pneg %p77
        %p264 = pneg %p74
        %p265 = scmp.lt.s32.totalorder %s23, 0
        %s266 = scalar_select %p265, %s23, 0
        %s267 = scalar_lea.vmem %s2, %s266
        %p268 = pneg %p103
        %p269 = pneg %p100
        %p270 = pneg %p129
        %p271 = pneg %p126
        %p272 = pneg %p150
        %p273 = pneg %p147
        %p274 = pneg %p176
        %p275 = pneg %p173
        %p276 = scmp.lt.s32.totalorder %s22, 1
        %s277 = scalar_select %p276, %s22, 1
        %s278 = smul.addr %s277, 8
        %s279 = scalar_lea.vmem %s5, %s278
        %p280 = scmp.lt.s32.totalorder %s22, 1
        %s281 = scalar_select %p280, %s22, 1
        %s282 = smul.addr %s281, 8
        %s283 = scalar_lea.vmem %s0, %s282
        %p284 = scmp.lt.s32.totalorder %s23, 0
        %s285 = scalar_select %p284, %s23, 0
        %s286 = scalar_lea.vmem %s2, %s285
        %s287 = smul.u32 16, %s23
        %p288 = scmp.lt.s32.totalorder %s22, 1
        %s289 = scalar_select %p288, %s22, 1
        %s290 = smul.addr %s289, 8
        %s291 = scalar_lea.vmem %s5, %s290
        %p293 = scmp.eq.s32.totalorder %s23, 0
        // Predicated region
        $region49: #{_ffn_forward_impl.1} parent=39 // pred_check
          %p294 = pneg %p293
        $region50: #{_ffn_forward_impl.1} parent=39 // pred_check_branch
          %296 = sbr.rel (%p294) target = $region52
        $region51: #{_ffn_forward_impl.1} parent=39 // pred_region
          %297 = vst [vmem:[#allocation2] sm:$0xff] 0.0
        $region52: #{_ffn_forward_impl.1} parent=39 // pred_fallthru
          _
        %v298 = vld [vmem:[%s283] sm:$0xff]
        %v299 = vpack.c.bf16 %v298, %v298
        %v300 = vld [vmem:[#allocation3] sm:$0xf]
        %v301 = vld [vmem:[#allocation3 + $0x4] sm:$0xf]
        %v302 = vld [vmem:[#allocation3 + $0x8] sm:$0xf]
        %v303 = vld [vmem:[#allocation3 + $0xc] sm:$0xf]
        %v304 = vld [vmem:[#allocation3 + $0x10] sm:$0xf]
        %v305 = vld [vmem:[#allocation3 + $0x14] sm:$0xf]
        %v306 = vld [vmem:[#allocation3 + $0x18] sm:$0xf]
        %v307 = vld [vmem:[#allocation3 + $0x1c] sm:$0xf]
        %v308 = vld [vmem:[#allocation3 + $0x20] sm:$0xf]
        %v309 = vld [vmem:[#allocation3 + $0x24] sm:$0xf]
        %v310 = vld [vmem:[#allocation3 + $0x28] sm:$0xf]
        %v311 = vld [vmem:[#allocation3 + $0x2c] sm:$0xf]
        %v312 = vld [vmem:[#allocation3 + $0x30] sm:$0xf]
        %v313 = vld [vmem:[#allocation3 + $0x34] sm:$0xf]
        %v314 = vld [vmem:[#allocation3 + $0x38] sm:$0xf]
        %v315 = vld [vmem:[#allocation3 + $0x3c] sm:$0xf]
        %v316 = vld [vmem:[%s286] sm:$0x1]
        %v318 = vlaneseq
        %v319 = vshrl.u32 %v318, 7
        %v320 = vsub.s32 0, %v319
        %v321 = vrot.slane %v316, %v320
        %v339 = vunpack.c.l.b16 %v300
        %v340 = vunpack.c.l.b16 %v301
        %v341 = vunpack.c.l.b16 %v302
        %v342 = vunpack.c.l.b16 %v303
        %v343 = vunpack.c.l.b16 %v304
        %v344 = vunpack.c.l.b16 %v305
        %v345 = vunpack.c.l.b16 %v306
        %v346 = vunpack.c.l.b16 %v307
        %v347 = vunpack.c.l.b16 %v308
        %v348 = vunpack.c.l.b16 %v309
        %v349 = vunpack.c.l.b16 %v310
        %v350 = vunpack.c.l.b16 %v311
        %v351 = vunpack.c.l.b16 %v312
        %v352 = vunpack.c.l.b16 %v313
        %v353 = vunpack.c.l.b16 %v314
        %v354 = vunpack.c.l.b16 %v315
        %v355 = vpack.c.b16 %v340, %v339
        %v356 = vpack.c.b16 %v342, %v341
        %v357 = vpack.c.b16 %v344, %v343
        %v358 = vpack.c.b16 %v346, %v345
        %v359 = vpack.c.b16 %v348, %v347
        %v360 = vpack.c.b16 %v350, %v349
        %v361 = vpack.c.b16 %v352, %v351
        %v362 = vpack.c.b16 %v354, %v353
        %371 = vmatprep.subr.bf16.mxu0 0
        %372 = vmatpush1.bf16.msra.mxu0 %v355
        %373 = vmatprep.subr.bf16.mxu0 0
        %374 = vmatpush1.bf16.msra.mxu0 %v356
        %375 = vmatprep.subr.bf16.mxu0 0
        %376 = vmatpush1.bf16.msra.mxu0 %v357
        %377 = vmatprep.subr.bf16.mxu0 0
        %378 = vmatpush1.bf16.msra.mxu0 %v358
        %379 = vmatprep.subr.bf16.mxu0 0
        %380 = vmatpush1.bf16.msra.mxu0 %v359
        %381 = vmatprep.subr.bf16.mxu0 0
        %382 = vmatpush1.bf16.msra.mxu0 %v360
        %383 = vmatprep.subr.bf16.mxu0 0
        %384 = vmatpush1.bf16.msra.mxu0 %v361
        %385 = vmatprep.subr.bf16.mxu0 0
        %386 = vmatpush1.bf16.msra.mxu0 %v362
        %387 = vmatprep.subr.bf16.mxu0 0
        %388 = vmatpush1.bf16.msra.mxu0 0
        %389 = vmatprep.subr.bf16.mxu0 0
        %390 = vmatpush1.bf16.msra.mxu0 0
        %391 = vmatprep.subr.bf16.mxu0 0
        %392 = vmatpush1.bf16.msra.mxu0 0
        %393 = vmatprep.subr.bf16.mxu0 0
        %394 = vmatpush1.bf16.msra.mxu0 0
        %395 = vmatprep.subr.bf16.mxu0 0
        %396 = vmatpush1.bf16.msra.mxu0 0
        %397 = vmatprep.subr.bf16.mxu0 0
        %398 = vmatpush1.bf16.msra.mxu0 0
        %399 = vmatprep.subr.bf16.mxu0 0
        %400 = vmatpush1.bf16.msra.mxu0 0
        %401 = vmatprep.subr.bf16.mxu0 0
        %402 = vmatpush1.bf16.msra.mxu0 0
        %403 = vmatprep.mubr.bf16.mxu0 0
        %404 = vmatmul.mubr.bf16.gmra.mrb[0].mxu0 %v299
        %v405 = vpop.f32.mrb[0].mxu0
        %v406 = vadd.f32 %v321, %v405
        %v407 = vpop.f32.mrb[0].mxu0
        %v408 = vpop.f32.mrb[0].mxu0
        %v409 = vpop.f32.mrb[0].mxu0
        %410 = vdwg.mxu0
        %v411 = vmax.f32 %v406, 0.0
        %v412 = vld [vmem:[#allocation2] sm:$0xff]
        %v413 = vpack.c.bf16 %v411, %v411
        %v414 = vld [vmem:[#allocation5] sm:$0xf]
        %v415 = vld [vmem:[#allocation5 + $0x4] sm:$0xf]
        %v416 = vld [vmem:[#allocation5 + $0x8] sm:$0xf]
        %v417 = vld [vmem:[#allocation5 + $0xc] sm:$0xf]
        %v418 = vld [vmem:[#allocation5 + $0x10] sm:$0xf]
        %v419 = vld [vmem:[#allocation5 + $0x14] sm:$0xf]
        %v420 = vld [vmem:[#allocation5 + $0x18] sm:$0xf]
        %v421 = vld [vmem:[#allocation5 + $0x1c] sm:$0xf]
        %v422 = vld [vmem:[#allocation5 + $0x20] sm:$0xf]
        %v423 = vld [vmem:[#allocation5 + $0x24] sm:$0xf]
        %v424 = vld [vmem:[#allocation5 + $0x28] sm:$0xf]
        %v425 = vld [vmem:[#allocation5 + $0x2c] sm:$0xf]
        %v426 = vld [vmem:[#allocation5 + $0x30] sm:$0xf]
        %v427 = vld [vmem:[#allocation5 + $0x34] sm:$0xf]
        %v428 = vld [vmem:[#allocation5 + $0x38] sm:$0xf]
        %v429 = vld [vmem:[#allocation5 + $0x3c] sm:$0xf]
        %v446 = vunpack.c.l.b16 %v414
        %v447 = vunpack.c.l.b16 %v415
        %v448 = vunpack.c.l.b16 %v416
        %v449 = vunpack.c.l.b16 %v417
        %v450 = vunpack.c.l.b16 %v418
        %v451 = vunpack.c.l.b16 %v419
        %v452 = vunpack.c.l.b16 %v420
        %v453 = vunpack.c.l.b16 %v421
        %v454 = vunpack.c.l.b16 %v422
        %v455 = vunpack.c.l.b16 %v423
        %v456 = vunpack.c.l.b16 %v424
        %v457 = vunpack.c.l.b16 %v425
        %v458 = vunpack.c.l.b16 %v426
        %v459 = vunpack.c.l.b16 %v427
        %v460 = vunpack.c.l.b16 %v428
        %v461 = vunpack.c.l.b16 %v429
        %v462 = vpack.c.b16 %v447, %v446
        %v463 = vpack.c.b16 %v449, %v448
        %v464 = vpack.c.b16 %v451, %v450
        %v465 = vpack.c.b16 %v453, %v452
        %v466 = vpack.c.b16 %v455, %v454
        %v467 = vpack.c.b16 %v457, %v456
        %v468 = vpack.c.b16 %v459, %v458
        %v469 = vpack.c.b16 %v461, %v460
        %478 = vmatprep.subr.bf16.mxu0 0
        %479 = vmatpush1.bf16.msra.mxu0 %v462
        %480 = vmatprep.subr.bf16.mxu0 0
        %481 = vmatpush1.bf16.msra.mxu0 %v463
        %482 = vmatprep.subr.bf16.mxu0 0
        %483 = vmatpush1.bf16.msra.mxu0 %v464
        %484 = vmatprep.subr.bf16.mxu0 0
        %485 = vmatpush1.bf16.msra.mxu0 %v465
        %486 = vmatprep.subr.bf16.mxu0 0
        %487 = vmatpush1.bf16.msra.mxu0 %v466
        %488 = vmatprep.subr.bf16.mxu0 0
        %489 = vmatpush1.bf16.msra.mxu0 %v467
        %490 = vmatprep.subr.bf16.mxu0 0
        %491 = vmatpush1.bf16.msra.mxu0 %v468
        %492 = vmatprep.subr.bf16.mxu0 0
        %493 = vmatpush1.bf16.msra.mxu0 %v469
        %494 = vmatprep.subr.bf16.mxu0 0
        %495 = vmatpush1.bf16.msra.mxu0 0
        %496 = vmatprep.subr.bf16.mxu0 0
        %497 = vmatpush1.bf16.msra.mxu0 0
        %498 = vmatprep.subr.bf16.mxu0 0
        %499 = vmatpush1.bf16.msra.mxu0 0
        %500 = vmatprep.subr.bf16.mxu0 0
        %501 = vmatpush1.bf16.msra.mxu0 0
        %502 = vmatprep.subr.bf16.mxu0 0
        %503 = vmatpush1.bf16.msra.mxu0 0
        %504 = vmatprep.subr.bf16.mxu0 0
        %505 = vmatpush1.bf16.msra.mxu0 0
        %506 = vmatprep.subr.bf16.mxu0 0
        %507 = vmatpush1.bf16.msra.mxu0 0
        %508 = vmatprep.subr.bf16.mxu0 0
        %509 = vmatpush1.bf16.msra.mxu0 0
        %510 = vmatprep.mubr.bf16.mxu0 0
        %511 = vmatmul.mubr.bf16.gmra.mrb[0].mxu0 %v413
        %v512 = vpop.f32.mrb[0].mxu0
        %v513 = vadd.f32 0.0, %v512
        %v514 = vpop.f32.mrb[0].mxu0
        %v515 = vpop.f32.mrb[0].mxu0
        %v516 = vpop.f32.mrb[0].mxu0
        %517 = vdwg.mxu0
        %v518 = vadd.f32 %v412, %v513
        %519 = vst [vmem:[#allocation2] sm:$0xff] %v518
        // Predicated region
        $region53: #{_ffn_forward_impl.1} parent=39 // pred_check
          %p520 = pneg %p293
        $region54: #{_ffn_forward_impl.1} parent=39 // pred_check_branch
          %522 = sbr.rel (%p520) target = $region56
        $region55: #{_ffn_forward_impl.1} parent=39 // pred_region
          %v523 = vld [vmem:[#allocation2] sm:$0xff]
          %v524 = vld [vmem:[%s4] sm:$0x1]
          %v526 = vlaneseq
          %v527 = vshrl.u32 %v526, 7
          %v528 = vsub.s32 0, %v527
          %v529 = vrot.slane %v524, %v528
          %v531 = vadd.f32 %v523, %v529
          %532 = vst [vmem:[%s291] sm:$0xff] %v531
        $region56: #{_ffn_forward_impl.1} parent=39 // pred_fallthru
          _
        %p533 = scmp.lt.s32.totalorder %s22, 1
        %s534 = scalar_select %p533, %s22, 1
        %s535 = smul.addr %s534, 8
        %s536 = scalar_lea.vmem %s5, %s535
        // Predicated region
        $region57: #{_ffn_forward_impl.1} parent=39 // pred_check
          %p537 = pneg %p173
        $region58: #{_ffn_forward_impl.1} parent=39 // pred_check_branch
          %539 = sbr.rel (%p537) target = $region60
        $region59: #{_ffn_forward_impl.1} parent=39 // pred_region
          _
        $region60: #{_ffn_forward_impl.1} parent=39 // pred_fallthru
          _
      $region40: #{_ffn_forward_impl.1} parent=5 // pred_fallthru
        _
      %p540 = scmp.le.s32.totalorder 2, %s13
      // Predicated region
      $region61: #{_ffn_forward_impl.1} parent=5 // pred_check
        %p541 = pneg %p540
      $region62: #{_ffn_forward_impl.1} parent=5 // pred_check_branch
        %543 = sbr.rel (%p541) target = $region64
      $region63: #{_ffn_forward_impl.1} parent=5 // pred_region
        %s544 = ssub.s32 %s13, 2
        // Predicated region
        $region65: #{_ffn_forward_impl.1} parent=63 // pred_check
          %p545 = pneg %p179
        $region66: #{_ffn_forward_impl.1} parent=63 // pred_check_branch
          %547 = sbr.rel (%p545) target = $region68
        $region67: #{_ffn_forward_impl.1} parent=63 // pred_region
          %p548 = scmp.lt.s32.totalorder %s24, 1
          %s549 = scalar_select %p548, %s24, 1
          %s550 = smul.addr %s549, 8
          %s551 = scalar_lea.vmem %s5, %s550
        $region68: #{_ffn_forward_impl.1} parent=63 // pred_fallthru
          _
      $region64: #{_ffn_forward_impl.1} parent=5 // pred_fallthru
        _
    $region6: #{_ffn_forward_impl.1} parent=1 // loop_footer
      %s17 = sadd.s32 1, %s13
    $region7: #{_ffn_forward_impl.1} parent=1 // loop_footer_branch
      %12 = sbr.rel target = $region3
    $region8: #{_ffn_forward_impl.1} parent=1 // loop_exit
      _
    %552 = vsyncpa [#allocation4], 1
    %s553 = scalar_lea.sflag [#allocation4], 1
    %554 = vsyncpa %s553, 1
    %555 = vsyncpa [#allocation6], 1

</llo_original>
